<compile_context>
chip_gen: v6e
topology: v6e:2x2x1
jax: 0.10.0
libtpu: 0.0.40
codegen_flags: <defaults>
</compile_context>

<pallas_src>
import math
import functools

import jax
import jax.numpy as jnp
import numpy as np
from jax import lax
from jax.experimental import pallas as pl
from jax.experimental.pallas import tpu as pltpu


def _build_pool_matrix(seq_len, cls_tokens, stride):
    """Dense P with out = P @ x == pool_tensor(x, cls_tokens, 'mean', stride):
    cls passthrough + ceil-mode strided mean (partial last window) + zero pad
    of the pooled length to a multiple of 8."""
    rest = seq_len - cls_tokens
    npool = math.ceil(rest / stride)
    lp = cls_tokens + npool
    lp_pad = 8 * math.ceil(lp / 8)
    P = np.zeros((lp_pad, seq_len), dtype=np.float32)
    for j in range(cls_tokens):                      # cls tokens pass through
        P[j, j] = 1.0
    for w in range(npool):                           # ceil-mode mean pooling
        start = cls_tokens + w * stride
        end = min(start + stride, seq_len)
        P[cls_tokens + w, start:end] = 1.0 / (end - start)
    return P, lp_pad


def _block_diag_conv(w, groups):
    """Fold a kernel-size-1 grouped Conv1d weight (out_c, in_c//groups) into a
    dense (in_c, out_c) matrix so that y = x @ dense matches the grouped conv."""
    out_c, in_pg = w.shape
    out_pg = out_c // groups
    in_c = in_pg * groups
    dense = jnp.zeros((in_c, out_c), w.dtype)
    for g in range(groups):
        dense = dense.at[g * in_pg:(g + 1) * in_pg,
                         g * out_pg:(g + 1) * out_pg].set(
            w[g * out_pg:(g + 1) * out_pg, :].T)
    return dense


def _build_block_pool(P, tbg, L_pad):
    """Block-diagonal pooling matrix so the whole tbg-group block is pooled with
    a single MXU matmul (row dim = tbg*lp_pad instead of 8-row slivers)."""
    lp_pad, L = P.shape
    Pb = np.zeros((tbg * lp_pad, tbg * L_pad), dtype=np.float32)
    for t in range(tbg):
        Pb[t * lp_pad:(t + 1) * lp_pad, t * L_pad:t * L_pad + L] = P
    return jnp.asarray(Pb, dtype=jnp.bfloat16)


def _compress_kernel(x_ref, p_ref, wcat_ref, m_ref, g_ref, b_ref, o_ref,
                     *, gd, eps):
    # x_ref    : (tbg*L_pad, GD)         bf16 — tbg lane-packed groups, stacked rows
    # p_ref    : (tbg*lp_pad, tbg*L_pad) bf16 — block-diag pooling matrix
    # wcat_ref : (GD, 2*GD)              bf16 — [Wf | Wf@M]: contract + folded mean
    # m_ref    : (GD, GD)                bf16 — block-diag 1/D (variance reduce)
    # One pooling matmul for the whole block (this is qskip). bf16 ops, f32 acc.
    pooled = jnp.dot(p_ref[...], x_ref[...], preferred_element_type=jnp.float32)
    # One 256-wide matmul yields [c | mean(c)] together (mean folded into weight).
    cm = jnp.dot(pooled.astype(jnp.bfloat16), wcat_ref[...],
                 preferred_element_type=jnp.float32)
    c = cm[:, :gd]
    mean = cm[:, gd:]
    d = c - mean
    # Variance via block-diag averaging matmul; bf16 operands keep the MXU on the
    # single-pass path and the reduction lane-dense (no cross-lane reshape).
    var = jnp.dot((d * d).astype(jnp.bfloat16), m_ref[...],
                  preferred_element_type=jnp.float32)
    ln = d * lax.rsqrt(var + eps) * g_ref[...] + b_ref[...]
    # qskip + LayerNorm(...), lane-dense (128-wide) store.
    o_ref[...] = (pooled + ln).astype(o_ref.dtype)


def compress_seq_mean_pooling(query, w_expand, w_contract, gamma, beta, *,
                              cls_tokens, stride, n_head, eps=1e-6,
                              groups_per_step=32):
    B, L, D = query.shape
    P, lp_pad = _build_pool_matrix(L, cls_tokens, stride)
    L_pad = 8 * math.ceil(L / 8)                      # sublane-aligned row merge

    # --- fold grouped 1x1 convs to dense and fuse algebraically (exact) ------
    We = _block_diag_conv(w_expand, n_head)           # (D, D)
    Wc = _block_diag_conv(w_contract, n_head)         # (2D, D)
    Wf = We @ Wc[:D, :] + Wc[D:, :]                   # (D, D)

    # --- lane packing: G batches share the 128-lane dim; pad D if needed -----
    if D >= 128:
        D_pad = 128 * math.ceil(D / 128)
        G = 1
    else:
        D_pad = next(d for d in (1, 2, 4, 8, 16, 32, 64, 128) if d >= D)
        G = 128 // D_pad
    GD = G * D_pad                                    # always a multiple of 128

    # Zero-pad the feature dim; LN statistics are still taken over the first D
    # features only (M has 1/D in its top-left DxD block, zeros elsewhere).
    Wf_p = jnp.zeros((D_pad, D_pad), jnp.float32).at[:D, :D].set(Wf)
    M_p = jnp.zeros((D_pad, D_pad), jnp.float32).at[:D, :D].set(1.0 / D)
    Wm_p = Wf_p @ M_p                                 # mean folded into the weight
    eyeG = jnp.eye(G, dtype=jnp.float32)
    W_cat = jnp.concatenate([jnp.kron(eyeG, Wf_p), jnp.kron(eyeG, Wm_p)],
                            axis=1).astype(jnp.bfloat16)        # (GD, 2GD)
    M_pack = jnp.kron(eyeG, M_p).astype(jnp.bfloat16)           # (GD, GD)
    gamma_p = jnp.zeros((D_pad,), jnp.float32).at[:D].set(gamma)
    beta_p = jnp.zeros((D_pad,), jnp.float32).at[:D].set(beta)
    gamma_t = jnp.tile(gamma_p, (G,)).reshape(1, GD)
    beta_t = jnp.tile(beta_p, (G,)).reshape(1, GD)

    # --- batch blocking: tbg packed groups per grid step ----------------------
    NG = -(-B // G)                                   # number of packed groups
    tbg = max(1, min(groups_per_step, NG))
    if NG >= 2:
        tbg = min(tbg, -(-NG // 2))                   # >=2 grid blocks (v7x dual-TC)
    n_blocks = -(-NG // tbg)
    if n_blocks % 2 and NG >= 2:
        n_blocks += 1                                 # even split across the two TCs
        tbg = -(-NG // n_blocks)
    NG_pad = n_blocks * tbg
    B_pad = NG_pad * G

    # Pack (B, L, D) -> (NG_pad*L_pad, G*D_pad): matmul row dim is the whole
    # block and every store is 128-lane dense.  pad+transpose+cast fuse into one
    # XLA copy; at production scale keep this packed layout for the consumer.
    q_pad = jnp.zeros((B_pad, L_pad, D_pad), query.dtype).at[:B, :L, :D].set(query)
    x_flat = (q_pad.reshape(NG_pad, G, L_pad, D_pad)
              .transpose(0, 2, 1, 3)
              .reshape(NG_pad * L_pad, GD)
              .astype(jnp.bfloat16))

    P_big = _build_block_pool(P, tbg, L_pad)          # (tbg*lp_pad, tbg*L_pad) bf16

    kernel = functools.partial(_compress_kernel, gd=GD, eps=eps)

    R = tbg * lp_pad
    flops_per_block = (2 * R * (tbg * L_pad) * GD     # pool
                       + 2 * R * GD * (2 * GD)        # fused contract + mean
                       + 2 * R * GD * GD              # variance
                       + 10 * R * GD)                 # elementwise epilogue
    cost = pl.CostEstimate(
        flops=int(n_blocks * flops_per_block),
        transcendentals=int(n_blocks * R * GD),
        bytes_accessed=int(x_flat.size * 2 + P_big.size * 2 + W_cat.size * 2
                           + M_pack.size * 2 + (gamma_t.size + beta_t.size) * 4
                           + NG_pad * lp_pad * GD * 4))

    # VMEM footprint per step is tiny (<1 MiB) even at tbg=128, so no
    # vmem_limit_bytes override is needed (also well inside v7x's 64 MiB).
    out_flat = pl.pallas_call(
        kernel,
        out_shape=jax.ShapeDtypeStruct((NG_pad * lp_pad, GD), query.dtype),
        grid=(n_blocks,),
        in_specs=[
            pl.BlockSpec((tbg * L_pad, GD), lambda i: (i, 0)),            # packed queries
            pl.BlockSpec((tbg * lp_pad, tbg * L_pad), lambda i: (0, 0)),  # pooling (const)
            pl.BlockSpec((GD, 2 * GD), lambda i: (0, 0)),                 # [Wf | Wf@M] (const)
            pl.BlockSpec((GD, GD), lambda i: (0, 0)),                     # LN var reduce (const)
            pl.BlockSpec((1, GD), lambda i: (0, 0)),                      # gamma (tiled)
            pl.BlockSpec((1, GD), lambda i: (0, 0)),                      # beta (tiled)
        ],
        out_specs=pl.BlockSpec((tbg * lp_pad, GD), lambda i: (i, 0)),
        compiler_params=pltpu.CompilerParams(
            dimension_semantics=("parallel",)),
        cost_estimate=cost,
    )(x_flat, P_big, W_cat, M_pack, gamma_t, beta_t)

    out = (out_flat.reshape(NG_pad, lp_pad, G, D_pad)
           .transpose(0, 2, 1, 3)
           .reshape(B_pad, lp_pad, D_pad)[:B, :, :D])
    return out


# ------------------------- references for validation -------------------------
def _reference_f32(query, w_expand, w_contract, gamma, beta, *,
                   cls_tokens, stride, n_head, eps):
    """Mirror of the PyTorch forward (f32 math)."""
    B, L, D = query.shape
    P_np, lp_pad = _build_pool_matrix(L, cls_tokens, stride)
    P = jnp.asarray(P_np)
    We = _block_diag_conv(w_expand, n_head)
    Wc = _block_diag_conv(w_contract, n_head)
    qskip = jnp.einsum('pl,bld->bpd', P, query)
    cat = jnp.concatenate([query @ We, query], axis=-1)
    pooled = jnp.einsum('pl,bld->bpd', P, cat)
    c = pooled @ Wc
    m = c.mean(-1, keepdims=True)
    v = ((c - m) ** 2).mean(-1, keepdims=True)
    return qskip + ((c - m) * lax.rsqrt(v + eps)) * gamma + beta, lp_pad


def _reference_bf16_mirror(query, w_expand, w_contract, gamma, beta, *,
                           cls_tokens, stride, n_head, eps):
    """bf16-operand mirror of the fused kernel math (valid when D needs no pad)."""
    B, L, D = query.shape
    P_np, _ = _build_pool_matrix(L, cls_tokens, stride)
    Pb = jnp.asarray(P_np, jnp.bfloat16)
    We = _block_diag_conv(w_expand, n_head)
    Wc = _block_diag_conv(w_contract, n_head)
    Wf = We @ Wc[:D, :] + Wc[D:, :]
    Mf = jnp.full((D, D), 1.0 / D, jnp.float32)
    Wm = Wf @ Mf
    pooled = jnp.einsum('pl,bld->bpd', Pb, query.astype(jnp.bfloat16),
                        preferred_element_type=jnp.float32)
    pb = pooled.astype(jnp.bfloat16)
    c = jnp.einsum('bpd,de->bpe', pb, Wf.astype(jnp.bfloat16),
                   preferred_element_type=jnp.float32)
    mean = jnp.einsum('bpd,de->bpe', pb, Wm.astype(jnp.bfloat16),
                      preferred_element_type=jnp.float32)
    d = c - mean
    var = jnp.einsum('bpd,de->bpe', (d * d).astype(jnp.bfloat16),
                     Mf.astype(jnp.bfloat16), preferred_element_type=jnp.float32)
    return pooled + d * lax.rsqrt(var + eps) * gamma + beta


if __name__ == "__main__":
    eps = 1e-6
    key = jax.random.PRNGKey(0)

    configs = [
        # (B, L, D, n_head, cls_tokens, stride)
        (2, 11, 32, 4, 2, 2),   # partial last pooling window, single grid block
        (6, 13, 32, 4, 2, 2),   # multi-block grid (v7x two-block path)
        (5, 12, 24, 4, 2, 2),   # D not a divisor of 128 -> lane padded to 32
    ]

    for idx, (B, L, D, n_head, cls_tokens, stride) in enumerate(configs):
        key, k1, k2, k3, k4, k5 = jax.random.split(key, 6)
        query = jax.random.normal(k1, (B, L, D), jnp.float32)
        w_expand = 0.1 * jax.random.normal(k2, (D, D // n_head), jnp.float32)        # Conv1d(D, D, 1, groups=h)
        w_contract = 0.1 * jax.random.normal(k3, (D, 2 * D // n_head), jnp.float32)  # Conv1d(2D, D, 1, groups=h)
        gamma = 1.0 + 0.1 * jax.random.normal(k4, (D,), jnp.float32)
        beta = 0.1 * jax.random.normal(k5, (D,), jnp.float32)

        out = compress_seq_mean_pooling(query, w_expand, w_contract, gamma, beta,
                                        cls_tokens=cls_tokens, stride=stride,
                                        n_head=n_head, eps=eps)
        out = jax.block_until_ready(out)

        ref_f32, lp_pad = _reference_f32(query, w_expand, w_contract, gamma, beta,
                                         cls_tokens=cls_tokens, stride=stride,
                                         n_head=n_head, eps=eps)
        assert out.shape == (B, lp_pad, D), (idx, out.shape, (B, lp_pad, D))
        err_f32 = float(jnp.max(jnp.abs(out - ref_f32)))
        assert err_f32 < 1.5e-1, ("kernel vs f32 reference", idx, err_f32)

        if 128 % D == 0:   # tight check against an exact bf16 mirror of the fused math
            ref_b = _reference_bf16_mirror(query, w_expand, w_contract, gamma, beta,
                                           cls_tokens=cls_tokens, stride=stride,
                                           n_head=n_head, eps=eps)
            err_tight = float(jnp.max(jnp.abs(out - ref_b)))
            assert err_tight < 5e-3, ("kernel vs bf16-mirror reference", idx, err_tight)

    print("KERNEL_OK")
</pallas_src>

<mosaic_0001>
module attributes {stable_mosaic.version = 11 : i64} {
  func.func @_compress_kernel(%arg0: i32, %arg1: memref<16x128xbf16, #tpu.memory_space<vmem>>, %arg2: memref<8x16xbf16, #tpu.memory_space<vmem>>, %arg3: memref<128x256xbf16, #tpu.memory_space<vmem>>, %arg4: memref<128x128xbf16, #tpu.memory_space<vmem>>, %arg5: memref<1x128xf32, #tpu.memory_space<vmem>>, %arg6: memref<1x128xf32, #tpu.memory_space<vmem>>, %arg7: memref<8x128xf32, #tpu.memory_space<vmem>>) attributes {dimension_semantics = [#tpu.dimension_semantics<parallel>], iteration_bounds = array<i64: 1>, scalar_prefetch = 0 : i64, scratch_operands = 0 : i64, tpu.core_type = #tpu.core_type<tc>, window_params = [{transform_indices = @transform_0, window_bounds = array<i64: 16, 128>}, {pipeline_mode = #tpu.pipeline_mode<synchronous>, transform_indices = @transform_1, window_bounds = array<i64: 8, 16>}, {pipeline_mode = #tpu.pipeline_mode<synchronous>, transform_indices = @transform_2, window_bounds = array<i64: 128, 256>}, {pipeline_mode = #tpu.pipeline_mode<synchronous>, transform_indices = @transform_3, window_bounds = array<i64: 128, 128>}, {pipeline_mode = #tpu.pipeline_mode<synchronous>, transform_indices = @transform_4, window_bounds = array<i64: 1, 128>}, {pipeline_mode = #tpu.pipeline_mode<synchronous>, transform_indices = @transform_5, window_bounds = array<i64: 1, 128>}, {transform_indices = @transform_6, window_bounds = array<i64: 8, 128>}]} {
    %c0 = arith.constant 0 : index
    %c0_0 = arith.constant 0 : index
    %0 = vector.load %arg2[%c0, %c0_0] : memref<8x16xbf16, #tpu.memory_space<vmem>>, vector<8x16xbf16>
    %c0_1 = arith.constant 0 : index
    %c0_2 = arith.constant 0 : index
    %1 = vector.load %arg1[%c0_1, %c0_2] : memref<16x128xbf16, #tpu.memory_space<vmem>>, vector<16x128xbf16>
    %cst = arith.constant dense<0.000000e+00> : vector<8x128xf32>
    %2 = tpu.matmul %0, %1, %cst {dimension_numbers = #tpu.dot_dimension_numbers<[1], [0], [0], [1], [0, 0, 1, 1], [], []>} : vector<8x16xbf16>, vector<16x128xbf16>, vector<8x128xf32> -> vector<8x128xf32>
    %3 = arith.truncf %2 : vector<8x128xf32> to vector<8x128xbf16>
    %c0_3 = arith.constant 0 : index
    %c0_4 = arith.constant 0 : index
    %4 = vector.load %arg3[%c0_3, %c0_4] : memref<128x256xbf16, #tpu.memory_space<vmem>>, vector<128x256xbf16>
    %cst_5 = arith.constant dense<0.000000e+00> : vector<8x256xf32>
    %5 = tpu.matmul %3, %4, %cst_5 {dimension_numbers = #tpu.dot_dimension_numbers<[1], [0], [0], [1], [0, 0, 1, 1], [], []>} : vector<8x128xbf16>, vector<128x256xbf16>, vector<8x256xf32> -> vector<8x256xf32>
    %6 = vector.extract_strided_slice %5 {offsets = [0, 0], sizes = [8, 128], strides = [1, 1]} : vector<8x256xf32> to vector<8x128xf32>
    %7 = vector.extract_strided_slice %5 {offsets = [0, 128], sizes = [8, 128], strides = [1, 1]} : vector<8x256xf32> to vector<8x128xf32>
    %8 = arith.subf %6, %7 : vector<8x128xf32>
    %9 = arith.mulf %8, %8 : vector<8x128xf32>
    %10 = arith.truncf %9 : vector<8x128xf32> to vector<8x128xbf16>
    %c0_6 = arith.constant 0 : index
    %c0_7 = arith.constant 0 : index
    %11 = vector.load %arg4[%c0_6, %c0_7] : memref<128x128xbf16, #tpu.memory_space<vmem>>, vector<128x128xbf16>
    %cst_8 = arith.constant dense<0.000000e+00> : vector<8x128xf32>
    %12 = tpu.matmul %10, %11, %cst_8 {dimension_numbers = #tpu.dot_dimension_numbers<[1], [0], [0], [1], [0, 0, 1, 1], [], []>} : vector<8x128xbf16>, vector<128x128xbf16>, vector<8x128xf32> -> vector<8x128xf32>
    %cst_9 = arith.constant 9.99999997E-7 : f32
    %13 = vector.broadcast %cst_9 : f32 to vector<8x128xf32>
    %14 = arith.addf %12, %13 : vector<8x128xf32>
    %15 = math.rsqrt %14 : vector<8x128xf32>
    %16 = arith.mulf %8, %15 : vector<8x128xf32>
    %c0_10 = arith.constant 0 : index
    %c0_11 = arith.constant 0 : index
    %17 = vector.load %arg5[%c0_10, %c0_11] : memref<1x128xf32, #tpu.memory_space<vmem>>, vector<1x128xf32>
    %18 = vector.broadcast %17 : vector<1x128xf32> to vector<8x128xf32>
    %19 = arith.mulf %16, %18 : vector<8x128xf32>
    %c0_12 = arith.constant 0 : index
    %c0_13 = arith.constant 0 : index
    %20 = vector.load %arg6[%c0_12, %c0_13] : memref<1x128xf32, #tpu.memory_space<vmem>>, vector<1x128xf32>
    %21 = vector.broadcast %20 : vector<1x128xf32> to vector<8x128xf32>
    %22 = arith.addf %19, %21 : vector<8x128xf32>
    %23 = arith.addf %2, %22 : vector<8x128xf32>
    %c0_14 = arith.constant 0 : index
    %c0_15 = arith.constant 0 : index
    %24 = vector.load %arg7[%c0_14, %c0_15] : memref<8x128xf32, #tpu.memory_space<vmem>>, vector<8x128xf32>
    tpu.vector_store %arg7[%c0_14, %c0_15], %23 {strides = array<i32>} : memref<8x128xf32, #tpu.memory_space<vmem>>, vector<8x128xf32>,
    return
  }
  func.func @transform_0(%arg0: i32) -> (i32, i32) {
    %c0_i32 = arith.constant 0 : i32
    %c0_i32_0 = arith.constant 0 : i32
    return %arg0, %c0_i32 : i32, i32
  }
  func.func @transform_1(%arg0: i32) -> (i32, i32) {
    %c0_i32 = arith.constant 0 : i32
    %c0_i32_0 = arith.constant 0 : i32
    %c0_i32_1 = arith.constant 0 : i32
    return %c0_i32, %c0_i32_0 : i32, i32
  }
  func.func @transform_2(%arg0: i32) -> (i32, i32) {
    %c0_i32 = arith.constant 0 : i32
    %c0_i32_0 = arith.constant 0 : i32
    %c0_i32_1 = arith.constant 0 : i32
    return %c0_i32, %c0_i32_0 : i32, i32
  }
  func.func @transform_3(%arg0: i32) -> (i32, i32) {
    %c0_i32 = arith.constant 0 : i32
    %c0_i32_0 = arith.constant 0 : i32
    %c0_i32_1 = arith.constant 0 : i32
    return %c0_i32, %c0_i32_0 : i32, i32
  }
  func.func @transform_4(%arg0: i32) -> (i32, i32) {
    %c0_i32 = arith.constant 0 : i32
    %c0_i32_0 = arith.constant 0 : i32
    %c0_i32_1 = arith.constant 0 : i32
    return %c0_i32, %c0_i32_0 : i32, i32
  }
  func.func @transform_5(%arg0: i32) -> (i32, i32) {
    %c0_i32 = arith.constant 0 : i32
    %c0_i32_0 = arith.constant 0 : i32
    %c0_i32_1 = arith.constant 0 : i32
    return %c0_i32, %c0_i32_0 : i32, i32
  }
  func.func @transform_6(%arg0: i32) -> (i32, i32) {
    %c0_i32 = arith.constant 0 : i32
    %c0_i32_0 = arith.constant 0 : i32
    return %arg0, %c0_i32 : i32, i32
  }
}

</mosaic_0001>

<llo_original>
// kernel: tpu_custom_call.1
$region0: #{tpu_custom_call.1}
  #allocation0 [shape = 'u32[]', space=smem, size = 0x4, offset = 0x4, fixed_abs, tag = 'smem constant byte address 0x4 - core index']
  #allocation1 [shape = 'u32[144,128]{1,0:T(1,128)}', space=vmem, size = 0x12000, scoped, tag = 'internal scratch']
  %s0 = inlined_call_operand.hbm [shape: bf16[16,128], index: 0, kind: input, shape index: {}]
  %s1 = inlined_call_operand.hbm [shape: bf16[8,16], index: 1, kind: input, shape index: {}]
  %s2 = inlined_call_operand.hbm [shape: bf16[128,256], index: 2, kind: input, shape index: {}]
  %s3 = inlined_call_operand.hbm [shape: bf16[128,128], index: 3, kind: input, shape index: {}]
  %s4 = inlined_call_operand.vmem [shape: f32[1,128], index: 4, kind: input, shape index: {}]
  %s5 = inlined_call_operand.vmem [shape: f32[1,128], index: 5, kind: input, shape index: {}]
  %s6 = inlined_call_operand.hbm [shape: f32[8,128], index: 6, kind: output, shape index: {}]
  %s7 = sld [smem:[#allocation0]]
  $region50: #{tpu_custom_call.1} parent=0
    _
  %s9 = ssub.s32 1, %s7
  %s10 = scalar_select 0, %s9, %s7
  $region1: #{tpu_custom_call.1} parent=0
    #allocation2 [shape = 'u8[4096]{0}', space=vmem, size = 0x1000, scoped, tag = 'input window, operand 0, single buffered']
    #allocation3 [shape = 's32[1]{0}', space=sflag, size = 0x4, scoped, tag = 'scoped memory for tpu_custom_call.1']
    #allocation4 [shape = 's32[1]{0}', space=sflag, size = 0x4, scoped, tag = 'scoped memory for tpu_custom_call.1']
    #allocation5 [shape = 'u8[2048]{0}', space=vmem, size = 0x800, scoped, tag = 'input window, operand 1, single buffered']
    #allocation6 [shape = 's32[1]{0}', space=sflag, size = 0x4, scoped, tag = 'scoped memory for tpu_custom_call.1']
    #allocation7 [shape = 'u8[65536]{0}', space=vmem, size = 0x10000, scoped, tag = 'input window, operand 2, single buffered']
    #allocation8 [shape = 'u8[32768]{0}', space=vmem, size = 0x8000, scoped, tag = 'input window, operand 3, single buffered']
    #allocation9 [shape = 's32[1]{0}', space=sflag, size = 0x4, scoped, tag = 'scoped memory for tpu_custom_call.1']
    #allocation10 [shape = 'u8[4096]{0}', space=vmem, size = 0x1000, scoped, tag = 'output window, operand 0, single buffered']
    %11 = vsyncpa [#allocation3], 0
    %12 = vsyncpa [#allocation6], 0
    %13 = vsyncpa [#allocation9], 0
    %14 = vsyncpa [#allocation4], 0
    // Predicated region
    $region2: #{tpu_custom_call.1} parent=1 // pred_check
      _
    $region3: #{tpu_custom_call.1} parent=1 // pred_check_branch
      %16 = sbr.rel (0) target = $region5
    $region4: #{tpu_custom_call.1} parent=1 // pred_region
      %s18 = ssub.s32 128, 128
      %19 = vsyncadd [#allocation3], %s18
      %s20 = sshll.u32 [#allocation2], 4
      %s21 = int_to_ptr.vmem [resolvable:$true] %s20
      %26 = dma.hbm_to_vmem [thread:$0]  %s0, 128, %s21, [#allocation3], 64, 64, 4
    $region5: #{tpu_custom_call.1} parent=1 // pred_fallthru
      _
    // Predicated region
    $region6: #{tpu_custom_call.1} parent=1 // pred_check
      _
    $region7: #{tpu_custom_call.1} parent=1 // pred_check_branch
      %28 = sbr.rel (0) target = $region9
    $region8: #{tpu_custom_call.1} parent=1 // pred_region
      %s30 = ssub.s32 64, 64
      %31 = vsyncadd [#allocation6], %s30
      %s33 = sshll.u32 [#allocation5], 4
      %s34 = int_to_ptr.vmem [resolvable:$true] %s33
      %36 = dma.hbm_to_vmem [thread:$0]  %s1, 64, %s34, [#allocation6]
    $region9: #{tpu_custom_call.1} parent=1 // pred_fallthru
      _
    // Predicated region
    $region10: #{tpu_custom_call.1} parent=1 // pred_check
      _
    $region11: #{tpu_custom_call.1} parent=1 // pred_check_branch
      %38 = sbr.rel (0) target = $region13
    $region12: #{tpu_custom_call.1} parent=1 // pred_region
      %s40 = ssub.s32 2048, 2048
      %41 = vsyncadd [#allocation6], %s40
      %s42 = sshll.u32 [#allocation7], 4
      %s43 = int_to_ptr.vmem [resolvable:$true] %s42
      %48 = dma.hbm_to_vmem [thread:$0]  %s2, 2048, %s43, [#allocation6], 128, 128, 8
    $region13: #{tpu_custom_call.1} parent=1 // pred_fallthru
      _
    // Predicated region
    $region14: #{tpu_custom_call.1} parent=1 // pred_check
      _
    $region15: #{tpu_custom_call.1} parent=1 // pred_check_branch
      %50 = sbr.rel (0) target = $region17
    $region16: #{tpu_custom_call.1} parent=1 // pred_region
      %s52 = ssub.s32 1024, 1024
      %53 = vsyncadd [#allocation9], %s52
      %s54 = sshll.u32 [#allocation8], 4
      %s55 = int_to_ptr.vmem [resolvable:$true] %s54
      %60 = dma.hbm_to_vmem [thread:$0]  %s3, 1024, %s55, [#allocation9], 64, 64, 4
    $region17: #{tpu_custom_call.1} parent=1 // pred_fallthru
      _
    // Predicated region
    $region18: #{tpu_custom_call.1} parent=1 // pred_check
      _
    $region19: #{tpu_custom_call.1} parent=1 // pred_check_branch
      %62 = sbr.rel (0) target = $region21
    $region20: #{tpu_custom_call.1} parent=1 // pred_region
      _
    $region21: #{tpu_custom_call.1} parent=1 // pred_fallthru
      _
    // Predicated region
    $region22: #{tpu_custom_call.1} parent=1 // pred_check
      _
    $region23: #{tpu_custom_call.1} parent=1 // pred_check_branch
      %64 = sbr.rel (0) target = $region25
    $region24: #{tpu_custom_call.1} parent=1 // pred_region
      _
    $region25: #{tpu_custom_call.1} parent=1 // pred_fallthru
      _
    // Predicated region
    $region26: #{tpu_custom_call.1} parent=1 // pred_check
      _
    $region27: #{tpu_custom_call.1} parent=1 // pred_check_branch
      %66 = sbr.rel (0) target = $region29
    $region28: #{tpu_custom_call.1} parent=1 // pred_region
      %67 = dma.done [#allocation3], 128
    $region29: #{tpu_custom_call.1} parent=1 // pred_fallthru
      _
    // Predicated region
    $region30: #{tpu_custom_call.1} parent=1 // pred_check
      _
    $region31: #{tpu_custom_call.1} parent=1 // pred_check_branch
      %69 = sbr.rel (0) target = $region33
    $region32: #{tpu_custom_call.1} parent=1 // pred_region
      %70 = dma.done [#allocation6], 64
    $region33: #{tpu_custom_call.1} parent=1 // pred_fallthru
      _
    // Predicated region
    $region34: #{tpu_custom_call.1} parent=1 // pred_check
      _
    $region35: #{tpu_custom_call.1} parent=1 // pred_check_branch
      %72 = sbr.rel (0) target = $region37
    $region36: #{tpu_custom_call.1} parent=1 // pred_region
      %73 = dma.done [#allocation6], 2048
    $region37: #{tpu_custom_call.1} parent=1 // pred_fallthru
      _
    // Predicated region
    $region38: #{tpu_custom_call.1} parent=1 // pred_check
      _
    $region39: #{tpu_custom_call.1} parent=1 // pred_check_branch
      %75 = sbr.rel (0) target = $region41
    $region40: #{tpu_custom_call.1} parent=1 // pred_region
      %76 = dma.done [#allocation9], 1024
    $region41: #{tpu_custom_call.1} parent=1 // pred_fallthru
      _
    %v78 = vld [vmem:[#allocation5] sm:$0xf]
    %v79 = vld [vmem:[#allocation2] sm:$0xf]
    %v80 = vld [vmem:[#allocation2 + $0x4] sm:$0xf]
    %v83 = vunpack.c.l.b16 %v79
    %v84 = vunpack.c.l.b16 %v80
    %v85 = vpack.c.b16 %v84, %v83
    %vm87 = vcmask 130048
    %v89 = vsel %vm87, %v78, 0
    %91 = vmatprep.subr.bf16.mxu0 0
    %92 = vmatpush1.bf16.msra.mxu0 0
    %93 = vmatprep.subr.bf16.mxu0 0
    %94 = vmatpush1.bf16.msra.mxu0 0
    %95 = vmatprep.subr.bf16.mxu0 0
    %96 = vmatpush1.bf16.msra.mxu0 0
    %97 = vmatprep.subr.bf16.mxu0 0
    %98 = vmatpush1.bf16.msra.mxu0 0
    %99 = vmatprep.subr.bf16.mxu0 0
    %100 = vmatpush1.bf16.msra.mxu0 0
    %101 = vmatprep.subr.bf16.mxu0 0
    %102 = vmatpush1.bf16.msra.mxu0 0
    %103 = vmatprep.subr.bf16.mxu0 0
    %104 = vmatpush1.bf16.msra.mxu0 0
    %105 = vmatprep.subr.bf16.mxu0 0
    %106 = vmatpush1.bf16.msra.mxu0 %v85
    %107 = vmatprep.subr.bf16.mxu0 0
    %108 = vmatpush2.bf16.msra.mxu0 0
    %109 = vmatprep.subr.bf16.mxu0 0
    %110 = vmatpush2.bf16.msra.mxu0 0
    %111 = vmatprep.subr.bf16.mxu0 0
    %112 = vmatpush2.bf16.msra.mxu0 0
    %113 = vmatprep.subr.bf16.mxu0 0
    %114 = vmatpush2.bf16.msra.mxu0 0
    %115 = vmatprep.subr.bf16.mxu0 0
    %116 = vmatpush2.bf16.msra.mxu0 0
    %117 = vmatprep.subr.bf16.mxu0 0
    %118 = vmatpush2.bf16.msra.mxu0 0
    %119 = vmatprep.subr.bf16.mxu0 0
    %120 = vmatpush2.bf16.msra.mxu0 0
    %121 = vmatprep.subr.bf16.mxu0 0
    %122 = vmatpush2.bf16.msra.mxu0 0
    %123 = vmatprep.mubr.bf16.mxu0 0
    %124 = vmatmul.mubr.bf16.gmra.mxu0 %v89
    %v125 = vpop.f32.mrf.mxu0
    %v126 = vadd.f32 0.0, %v125
    %v127 = vpop.f32.mrf.mxu0
    %v128 = vpop.f32.mrf.mxu0
    %v129 = vpop.f32.mrf.mxu0
    %130 = vdwg.mxu0
    %v131 = vpack.c.bf16 %v126, %v126
    %v132 = vld [vmem:[#allocation7] sm:$0xff]
    %v133 = vld [vmem:[#allocation7 + $0x8] sm:$0xff]
    %v134 = vld [vmem:[#allocation7 + $0x10] sm:$0xff]
    %v135 = vld [vmem:[#allocation7 + $0x18] sm:$0xff]
    %v136 = vld [vmem:[#allocation7 + $0x20] sm:$0xff]
    %v137 = vld [vmem:[#allocation7 + $0x28] sm:$0xff]
    %v138 = vld [vmem:[#allocation7 + $0x30] sm:$0xff]
    %v139 = vld [vmem:[#allocation7 + $0x38] sm:$0xff]
    %v140 = vld [vmem:[#allocation7 + $0x40] sm:$0xff]
    %v141 = vld [vmem:[#allocation7 + $0x48] sm:$0xff]
    %v142 = vld [vmem:[#allocation7 + $0x50] sm:$0xff]
    %v143 = vld [vmem:[#allocation7 + $0x58] sm:$0xff]
    %v144 = vld [vmem:[#allocation7 + $0x60] sm:$0xff]
    %v145 = vld [vmem:[#allocation7 + $0x68] sm:$0xff]
    %v146 = vld [vmem:[#allocation7 + $0x70] sm:$0xff]
    %v147 = vld [vmem:[#allocation7 + $0x78] sm:$0xff]
    %v164 = vunpack.c.l.b16 %v132
    %v165 = vunpack.c.h.b16 %v132
    %v166 = vunpack.c.l.b16 %v133
    %v167 = vunpack.c.h.b16 %v133
    %v168 = vunpack.c.l.b16 %v134
    %v169 = vunpack.c.h.b16 %v134
    %v170 = vunpack.c.l.b16 %v135
    %v171 = vunpack.c.h.b16 %v135
    %v172 = vunpack.c.l.b16 %v136
    %v173 = vunpack.c.h.b16 %v136
    %v174 = vunpack.c.l.b16 %v137
    %v175 = vunpack.c.h.b16 %v137
    %v176 = vunpack.c.l.b16 %v138
    %v177 = vunpack.c.h.b16 %v138
    %v178 = vunpack.c.l.b16 %v139
    %v179 = vunpack.c.h.b16 %v139
    %v180 = vunpack.c.l.b16 %v140
    %v181 = vunpack.c.h.b16 %v140
    %v182 = vunpack.c.l.b16 %v141
    %v183 = vunpack.c.h.b16 %v141
    %v184 = vunpack.c.l.b16 %v142
    %v185 = vunpack.c.h.b16 %v142
    %v186 = vunpack.c.l.b16 %v143
    %v187 = vunpack.c.h.b16 %v143
    %v188 = vunpack.c.l.b16 %v144
    %v189 = vunpack.c.h.b16 %v144
    %v190 = vunpack.c.l.b16 %v145
    %v191 = vunpack.c.h.b16 %v145
    %v192 = vunpack.c.l.b16 %v146
    %v193 = vunpack.c.h.b16 %v146
    %v194 = vunpack.c.l.b16 %v147
    %v195 = vunpack.c.h.b16 %v147
    %v196 = vpack.c.b16 %v166, %v164
    %v197 = vpack.c.b16 %v167, %v165
    %v198 = vpack.c.b16 %v170, %v168
    %v199 = vpack.c.b16 %v171, %v169
    %v200 = vpack.c.b16 %v174, %v172
    %v201 = vpack.c.b16 %v175, %v173
    %v202 = vpack.c.b16 %v178, %v176
    %v203 = vpack.c.b16 %v179, %v177
    %v204 = vpack.c.b16 %v182, %v180
    %v205 = vpack.c.b16 %v183, %v181
    %v206 = vpack.c.b16 %v186, %v184
    %v207 = vpack.c.b16 %v187, %v185
    %v208 = vpack.c.b16 %v190, %v188
    %v209 = vpack.c.b16 %v191, %v189
    %v210 = vpack.c.b16 %v194, %v192
    %v211 = vpack.c.b16 %v195, %v193
    %228 = vmatprep.subr.bf16.mxu0 %v211
    %229 = vmatpush1.bf16.msra.mxu0 %v210
    %230 = vmatprep.subr.bf16.mxu0 %v209
    %231 = vmatpush1.bf16.msra.mxu0 %v208
    %232 = vmatprep.subr.bf16.mxu0 %v207
    %233 = vmatpush1.bf16.msra.mxu0 %v206
    %234 = vmatprep.subr.bf16.mxu0 %v205
    %235 = vmatpush1.bf16.msra.mxu0 %v204
    %236 = vmatprep.subr.bf16.mxu0 %v203
    %237 = vmatpush1.bf16.msra.mxu0 %v202
    %238 = vmatprep.subr.bf16.mxu0 %v201
    %239 = vmatpush1.bf16.msra.mxu0 %v200
    %240 = vmatprep.subr.bf16.mxu0 %v199
    %241 = vmatpush1.bf16.msra.mxu0 %v198
    %242 = vmatprep.subr.bf16.mxu0 %v197
    %243 = vmatpush1.bf16.msra.mxu0 %v196
    %244 = vmatprep.subr.bf16.mxu0 0
    %245 = vmatpush2.bf16.msra.mxu0 0
    %246 = vmatprep.subr.bf16.mxu0 0
    %247 = vmatpush2.bf16.msra.mxu0 0
    %248 = vmatprep.subr.bf16.mxu0 0
    %249 = vmatpush2.bf16.msra.mxu0 0
    %250 = vmatprep.subr.bf16.mxu0 0
    %251 = vmatpush2.bf16.msra.mxu0 0
    %252 = vmatprep.subr.bf16.mxu0 0
    %253 = vmatpush2.bf16.msra.mxu0 0
    %254 = vmatprep.subr.bf16.mxu0 0
    %255 = vmatpush2.bf16.msra.mxu0 0
    %256 = vmatprep.subr.bf16.mxu0 0
    %257 = vmatpush2.bf16.msra.mxu0 0
    %258 = vmatprep.subr.bf16.mxu0 0
    %259 = vmatpush2.bf16.msra.mxu0 0
    %260 = vmatprep.mubr.bf16.mxu0 0
    %261 = vmatmul.mubr.bf16.gmra.mxu0 %v131
    %v262 = vpop.f32.mrf.mxu0
    %v263 = vadd.f32 0.0, %v262
    %v264 = vpop.f32.mrf.mxu0
    %v265 = vadd.f32 0.0, %v264
    %v266 = vpop.f32.mrf.mxu0
    %v267 = vpop.f32.mrf.mxu0
    %268 = vdwg.mxu0
    %v269 = vsub.f32 %v263, %v265
    %v270 = vmul.f32 %v269, %v269
    %v271 = vpack.c.bf16 %v270, %v270
    %v272 = vld [vmem:[#allocation8] sm:$0xf]
    %v273 = vld [vmem:[#allocation8 + $0x4] sm:$0xf]
    %v274 = vld [vmem:[#allocation8 + $0x8] sm:$0xf]
    %v275 = vld [vmem:[#allocation8 + $0xc] sm:$0xf]
    %v276 = vld [vmem:[#allocation8 + $0x10] sm:$0xf]
    %v277 = vld [vmem:[#allocation8 + $0x14] sm:$0xf]
    %v278 = vld [vmem:[#allocation8 + $0x18] sm:$0xf]
    %v279 = vld [vmem:[#allocation8 + $0x1c] sm:$0xf]
    %v280 = vld [vmem:[#allocation8 + $0x20] sm:$0xf]
    %v281 = vld [vmem:[#allocation8 + $0x24] sm:$0xf]
    %v282 = vld [vmem:[#allocation8 + $0x28] sm:$0xf]
    %v283 = vld [vmem:[#allocation8 + $0x2c] sm:$0xf]
    %v284 = vld [vmem:[#allocation8 + $0x30] sm:$0xf]
    %v285 = vld [vmem:[#allocation8 + $0x34] sm:$0xf]
    %v286 = vld [vmem:[#allocation8 + $0x38] sm:$0xf]
    %v287 = vld [vmem:[#allocation8 + $0x3c] sm:$0xf]
    %v304 = vunpack.c.l.b16 %v272
    %v305 = vunpack.c.l.b16 %v273
    %v306 = vunpack.c.l.b16 %v274
    %v307 = vunpack.c.l.b16 %v275
    %v308 = vunpack.c.l.b16 %v276
    %v309 = vunpack.c.l.b16 %v277
    %v310 = vunpack.c.l.b16 %v278
    %v311 = vunpack.c.l.b16 %v279
    %v312 = vunpack.c.l.b16 %v280
    %v313 = vunpack.c.l.b16 %v281
    %v314 = vunpack.c.l.b16 %v282
    %v315 = vunpack.c.l.b16 %v283
    %v316 = vunpack.c.l.b16 %v284
    %v317 = vunpack.c.l.b16 %v285
    %v318 = vunpack.c.l.b16 %v286
    %v319 = vunpack.c.l.b16 %v287
    %v320 = vpack.c.b16 %v305, %v304
    %v321 = vpack.c.b16 %v307, %v306
    %v322 = vpack.c.b16 %v309, %v308
    %v323 = vpack.c.b16 %v311, %v310
    %v324 = vpack.c.b16 %v313, %v312
    %v325 = vpack.c.b16 %v315, %v314
    %v326 = vpack.c.b16 %v317, %v316
    %v327 = vpack.c.b16 %v319, %v318
    %336 = vmatprep.subr.bf16.mxu0 0
    %337 = vmatpush1.bf16.msra.mxu0 %v327
    %338 = vmatprep.subr.bf16.mxu0 0
    %339 = vmatpush1.bf16.msra.mxu0 %v326
    %340 = vmatprep.subr.bf16.mxu0 0
    %341 = vmatpush1.bf16.msra.mxu0 %v325
    %342 = vmatprep.subr.bf16.mxu0 0
    %343 = vmatpush1.bf16.msra.mxu0 %v324
    %344 = vmatprep.subr.bf16.mxu0 0
    %345 = vmatpush1.bf16.msra.mxu0 %v323
    %346 = vmatprep.subr.bf16.mxu0 0
    %347 = vmatpush1.bf16.msra.mxu0 %v322
    %348 = vmatprep.subr.bf16.mxu0 0
    %349 = vmatpush1.bf16.msra.mxu0 %v321
    %350 = vmatprep.subr.bf16.mxu0 0
    %351 = vmatpush1.bf16.msra.mxu0 %v320
    %352 = vmatprep.subr.bf16.mxu0 0
    %353 = vmatpush2.bf16.msra.mxu0 0
    %354 = vmatprep.subr.bf16.mxu0 0
    %355 = vmatpush2.bf16.msra.mxu0 0
    %356 = vmatprep.subr.bf16.mxu0 0
    %357 = vmatpush2.bf16.msra.mxu0 0
    %358 = vmatprep.subr.bf16.mxu0 0
    %359 = vmatpush2.bf16.msra.mxu0 0
    %360 = vmatprep.subr.bf16.mxu0 0
    %361 = vmatpush2.bf16.msra.mxu0 0
    %362 = vmatprep.subr.bf16.mxu0 0
    %363 = vmatpush2.bf16.msra.mxu0 0
    %364 = vmatprep.subr.bf16.mxu0 0
    %365 = vmatpush2.bf16.msra.mxu0 0
    %366 = vmatprep.subr.bf16.mxu0 0
    %367 = vmatpush2.bf16.msra.mxu0 0
    %368 = vmatprep.mubr.bf16.mxu0 0
    %369 = vmatmul.mubr.bf16.gmra.mxu0 %v271
    %v370 = vpop.f32.mrf.mxu0
    %v371 = vadd.f32 1e-06, %v370
    %v372 = vpop.f32.mrf.mxu0
    %v373 = vpop.f32.mrf.mxu0
    %v374 = vpop.f32.mrf.mxu0
    %375 = vdwg.mxu0
    %v376 = vrsqrt.pop %v371
    %v377 = vmul.f32 %v269, %v376
    %v378 = vld [vmem:[%s4] sm:$0x1]
    %v380 = vlaneseq
    %v381 = vshrl.u32 %v380, 7
    %v382 = vsub.s32 0, %v381
    %v383 = vrot.slane %v378, %v382
    %v385 = vmul.f32 %v377, %v383
    %v386 = vld [vmem:[%s5] sm:$0x1]
    %v388 = vlaneseq
    %v389 = vshrl.u32 %v388, 7
    %v390 = vsub.s32 0, %v389
    %v391 = vrot.slane %v386, %v390
    %v393 = vadd.f32 %v385, %v391
    %v394 = vadd.f32 %v126, %v393
    %395 = vst [vmem:[#allocation10] sm:$0xff] %v394
    // Predicated region
    $region42: #{tpu_custom_call.1} parent=1 // pred_check
      _
    $region43: #{tpu_custom_call.1} parent=1 // pred_check_branch
      %397 = sbr.rel (0) target = $region45
    $region44: #{tpu_custom_call.1} parent=1 // pred_region
      %s399 = ssub.s32 128, 128
      %400 = vsyncadd [#allocation4], %s399
      %s402 = sshll.u32 [#allocation10], 4
      %s403 = int_to_ptr.vmem [resolvable:$true] %s402
      %405 = dma.vmem_to_hbm [thread:$0]  %s403, 128, %s6, [#allocation4]
    $region45: #{tpu_custom_call.1} parent=1 // pred_fallthru
      _
    // Predicated region
    $region46: #{tpu_custom_call.1} parent=1 // pred_check
      _
    $region47: #{tpu_custom_call.1} parent=1 // pred_check_branch
      %407 = sbr.rel (0) target = $region49
    $region48: #{tpu_custom_call.1} parent=1 // pred_region
      %408 = dma.done [#allocation4], 128
    $region49: #{tpu_custom_call.1} parent=1 // pred_fallthru
      _
    %409 = vsyncpa [#allocation3], 1
    %410 = vsyncpa [#allocation6], 1
    %411 = vsyncpa [#allocation9], 1
    %412 = vsyncpa [#allocation4], 1

</llo_original>
